<compile_context>
chip_gen: v6e
topology: v6e:2x2x1
jax: 0.10.0
libtpu: 0.0.40
codegen_flags: <defaults>
</compile_context>

<pallas_src>
import jax
import jax.numpy as jnp
from jax.experimental import pallas as pl
from jax.experimental.pallas import tpu as pltpu


def _conv_mm_relu_kernel(x_ref, w_ref, b_ref, o_ref):
    # x_ref: (K, ts)   w_ref: (Co, K)   b_ref: (Co, 1) f32   o_ref: (Co, ts)
    acc = jnp.dot(w_ref[...], x_ref[...], preferred_element_type=jnp.float32)
    acc = acc + b_ref[...]                       # broadcast bias over columns
    o_ref[...] = jnp.maximum(acc, 0.0).astype(o_ref.dtype)


def _im2col(xp, k, stride, Ho, Wo):
    """xp: (B, Ci, Hp, Wp) zero-padded input -> (B, Ci*k*k, Ho*Wo).

    K-major rows / spatial-major lanes: matches weight.reshape(Co, Ci*k*k)
    and needs no post-hoc transpose.
    """
    B, Ci, Hp, Wp = xp.shape
    patches = []
    for kh in range(k):
        for kw in range(k):
            patches.append(
                jax.lax.slice(
                    xp,
                    (0, 0, kh, kw),
                    (B, Ci, kh + stride * (Ho - 1) + 1, kw + stride * (Wo - 1) + 1),
                    (1, 1, stride, stride),
                )
            )  # each: (B, Ci, Ho, Wo)
    col = jnp.stack(patches, axis=2)                  # (B, Ci, k*k, Ho, Wo)
    return col.reshape(B, Ci * k * k, Ho * Wo)        # (B, K, S)


class DownPallas:
    """Equivalent of models/blocks.py::Down (bn=None -> conv has bias, activate='relu')."""

    def __init__(self, in_channel, out_channel, kernel_size, if_add_coord=False,
                 *, key, compute_dtype=jnp.bfloat16):
        self.if_add_coord = if_add_coord
        self.k = int(kernel_size)
        self.stride = 2
        cin = in_channel + (2 if if_add_coord else 0)
        self.cin = cin
        self.cout = out_channel
        self.compute_dtype = compute_dtype
        kw, kb = jax.random.split(key)
        fan_in = cin * self.k * self.k
        bound = 1.0 / (fan_in ** 0.5)
        # deterministic synthetic parameters (mimics PyTorch's uniform fan-in init)
        self.weight = jax.random.uniform(
            kw, (out_channel, cin, self.k, self.k), jnp.float32, -bound, bound)
        self.bias = jax.random.uniform(kb, (out_channel,), jnp.float32, -bound, bound)

    def _add_coords(self, x):
        B, C, H, W = x.shape
        dtype = x.dtype
        coord_i = jnp.broadcast_to(
            jnp.arange(W, dtype=dtype).reshape(1, 1, 1, W), (B, 1, H, W))
        coord_j = jnp.broadcast_to(
            jnp.arange(H, dtype=dtype).reshape(1, 1, H, 1), (B, 1, H, W))
        return jnp.concatenate([x, coord_i, coord_j], axis=1)

    def __call__(self, x):
        if self.if_add_coord:
            x = self._add_coords(x)
        B, Ci, H, W = x.shape
        k, s = self.k, self.stride
        p = (k - 1) // 2
        Ho = (H + 2 * p - k) // s + 1
        Wo = (W + 2 * p - k) // s + 1
        S = Ho * Wo
        K = Ci * k * k
        Co = self.cout

        xp = jnp.pad(x, ((0, 0), (0, 0), (p, p), (p, p)))
        col = _im2col(xp, k, s, Ho, Wo)                 # (B, K, S)

        # Spatial tile: lane-dense (multiple of 128) and large to amortize
        # per-grid-step overhead; capped at 512 to stay comfortable in v7x's
        # smaller VMEM while still giving >=2 grid steps for megacore.
        ts = min(512, pl.cdiv(S, 128) * 128)
        Sp = pl.cdiv(S, ts) * ts
        if Sp != S:
            col = jnp.pad(col, ((0, 0), (0, 0), (0, Sp - S)))

        cd = self.compute_dtype
        Xc = col.astype(cd)                             # (B, K, Sp)
        Wm = self.weight.reshape(Co, K).astype(cd)      # (Co, K), already row-major
        bias2d = self.bias.reshape(Co, 1).astype(jnp.float32)

        itemsize = jnp.dtype(cd).itemsize
        cost = pl.CostEstimate(
            flops=int(2 * B * Sp * K * Co),
            transcendentals=0,
            bytes_accessed=int(B * K * Sp * itemsize + Co * K * itemsize
                               + B * Co * Sp * 4),
        )

        y = pl.pallas_call(
            _conv_mm_relu_kernel,
            out_shape=jax.ShapeDtypeStruct((B, Co, Sp), jnp.float32),
            grid=(B, Sp // ts),
            in_specs=[
                pl.BlockSpec((None, K, ts), lambda b, i: (b, 0, i)),   # X tile
                pl.BlockSpec((Co, K), lambda b, i: (0, 0)),            # weights (resident)
                pl.BlockSpec((Co, 1), lambda b, i: (0, 0)),            # bias (resident)
            ],
            out_specs=pl.BlockSpec((None, Co, ts), lambda b, i: (b, 0, i)),
            compiler_params=pltpu.CompilerParams(
                dimension_semantics=("parallel", "parallel")),
            cost_estimate=cost,
        )(Xc, Wm, bias2d)

        # Output is already (B, Co, spatial): plain reshape to NCHW, no transpose.
        y = y[:, :, :S].reshape(B, Co, Ho, Wo)
        return y.astype(x.dtype)


def _reference(down: DownPallas, x, compute_dtype=jnp.float32):
    """Plain-JAX reference (conv with operands cast to `compute_dtype`, f32 accumulation)."""
    if down.if_add_coord:
        x = down._add_coords(x)
    p = (down.k - 1) // 2
    y = jax.lax.conv_general_dilated(
        x.astype(compute_dtype), down.weight.astype(compute_dtype),
        window_strides=(2, 2), padding=[(p, p), (p, p)],
        dimension_numbers=("NCHW", "OIHW", "NCHW"),
        preferred_element_type=jnp.float32)
    y = y + down.bias.reshape(1, -1, 1, 1)
    return jnp.maximum(y, 0.0)


if __name__ == "__main__":
    key = jax.random.PRNGKey(0)
    k_x, k_p = jax.random.split(key)

    B, C, H, W = 2, 4, 16, 16
    x = jax.random.normal(k_x, (B, C, H, W), dtype=jnp.float32)

    # 1) f32 compute path: tight check against the f32 XLA conv reference.
    down_f32 = DownPallas(in_channel=C, out_channel=8, kernel_size=3,
                          if_add_coord=True, key=k_p, compute_dtype=jnp.float32)
    out = jax.block_until_ready(down_f32(x))
    ref = jax.block_until_ready(_reference(down_f32, x, jnp.float32))
    assert out.shape == (B, 8, H // 2, W // 2), out.shape
    assert jnp.allclose(out, ref, atol=1e-4, rtol=1e-4), float(jnp.abs(out - ref).max())

    # 2) bf16 operand fast path (default, matches perf guidance): compare
    #    against a reference that uses the same bf16 operand rounding with
    #    f32 accumulation.
    down_bf16 = DownPallas(in_channel=C, out_channel=8, kernel_size=3,
                           if_add_coord=True, key=k_p, compute_dtype=jnp.bfloat16)
    out_bf = jax.block_until_ready(down_bf16(x))
    ref_bf = jax.block_until_ready(_reference(down_bf16, x, jnp.bfloat16))
    assert out_bf.shape == (B, 8, H // 2, W // 2), out_bf.shape
    assert jnp.allclose(out_bf, ref_bf, atol=2e-3, rtol=2e-3), \
        float(jnp.abs(out_bf - ref_bf).max())

    print("KERNEL_OK")
</pallas_src>

<mosaic_0001>
module attributes {stable_mosaic.version = 11 : i64} {
  func.func @_conv_mm_relu_kernel(%arg0: i32, %arg1: i32, %arg2: memref<1x54x128xf32, #tpu.memory_space<vmem>>, %arg3: memref<8x54xf32, #tpu.memory_space<vmem>>, %arg4: memref<8x1xf32, #tpu.memory_space<vmem>>, %arg5: memref<1x8x128xf32, #tpu.memory_space<vmem>>) attributes {dimension_semantics = [#tpu.dimension_semantics<parallel>, #tpu.dimension_semantics<parallel>], iteration_bounds = array<i64: 2, 1>, scalar_prefetch = 0 : i64, scratch_operands = 0 : i64, tpu.core_type = #tpu.core_type<tc>, window_params = [{transform_indices = @transform_0, window_bounds = array<i64: 1, 54, 128>}, {pipeline_mode = #tpu.pipeline_mode<synchronous>, transform_indices = @transform_1, window_bounds = array<i64: 8, 54>}, {pipeline_mode = #tpu.pipeline_mode<synchronous>, transform_indices = @transform_2, window_bounds = array<i64: 8, 1>}, {transform_indices = @transform_3, window_bounds = array<i64: 1, 8, 128>}]} {
    %c0 = arith.constant 0 : index
    %c0_0 = arith.constant 0 : index
    %0 = vector.load %arg3[%c0, %c0_0] : memref<8x54xf32, #tpu.memory_space<vmem>>, vector<8x54xf32>
    %c0_1 = arith.constant 0 : index
    %c0_2 = arith.constant 0 : index
    %c0_3 = arith.constant 0 : index
    %1 = vector.load %arg2[%c0_1, %c0_2, %c0_3] : memref<1x54x128xf32, #tpu.memory_space<vmem>>, vector<1x54x128xf32>
    %2 = vector.shape_cast %1 : vector<1x54x128xf32> to vector<54x128xf32>
    %cst = arith.constant dense<0.000000e+00> : vector<8x128xf32>
    %3 = tpu.matmul %0, %2, %cst {dimension_numbers = #tpu.dot_dimension_numbers<[1], [0], [0], [1], [0, 0, 1, 1], [], []>} : vector<8x54xf32>, vector<54x128xf32>, vector<8x128xf32> -> vector<8x128xf32>
    %c0_4 = arith.constant 0 : index
    %c0_5 = arith.constant 0 : index
    %4 = vector.load %arg4[%c0_4, %c0_5] : memref<8x1xf32, #tpu.memory_space<vmem>>, vector<8x1xf32>
    %5 = vector.broadcast %4 : vector<8x1xf32> to vector<8x128xf32>
    %6 = arith.addf %3, %5 : vector<8x128xf32>
    %cst_6 = arith.constant 0.000000e+00 : f32
    %7 = vector.broadcast %cst_6 : f32 to vector<8x128xf32>
    %8 = arith.maximumf %6, %7 : vector<8x128xf32>
    %c0_7 = arith.constant 0 : index
    %c0_8 = arith.constant 0 : index
    %c0_9 = arith.constant 0 : index
    %9 = vector.load %arg5[%c0_7, %c0_8, %c0_9] : memref<1x8x128xf32, #tpu.memory_space<vmem>>, vector<1x8x128xf32>
    %10 = vector.shape_cast %9 : vector<1x8x128xf32> to vector<8x128xf32>
    %11 = vector.shape_cast %8 : vector<8x128xf32> to vector<1x8x128xf32>
    tpu.vector_store %arg5[%c0_7, %c0_8, %c0_9], %11 {strides = array<i32>} : memref<1x8x128xf32, #tpu.memory_space<vmem>>, vector<1x8x128xf32>,
    return
  }
  func.func @transform_0(%arg0: i32, %arg1: i32) -> (i32, i32, i32) {
    %c0_i32 = arith.constant 0 : i32
    %c0_i32_0 = arith.constant 0 : i32
    return %arg0, %c0_i32, %arg1 : i32, i32, i32
  }
  func.func @transform_1(%arg0: i32, %arg1: i32) -> (i32, i32) {
    %c0_i32 = arith.constant 0 : i32
    %c0_i32_0 = arith.constant 0 : i32
    %c0_i32_1 = arith.constant 0 : i32
    return %c0_i32, %c0_i32_0 : i32, i32
  }
  func.func @transform_2(%arg0: i32, %arg1: i32) -> (i32, i32) {
    %c0_i32 = arith.constant 0 : i32
    %c0_i32_0 = arith.constant 0 : i32
    %c0_i32_1 = arith.constant 0 : i32
    return %c0_i32, %c0_i32_0 : i32, i32
  }
  func.func @transform_3(%arg0: i32, %arg1: i32) -> (i32, i32, i32) {
    %c0_i32 = arith.constant 0 : i32
    %c0_i32_0 = arith.constant 0 : i32
    return %arg0, %c0_i32, %arg1 : i32, i32, i32
  }
}

</mosaic_0001>

<llo_original>
// kernel: tpu_custom_call.1
$region0: #{tpu_custom_call.1}
  #allocation0 [shape = 'u32[]', space=smem, size = 0x4, offset = 0x4, fixed_abs, tag = 'smem constant byte address 0x4 - core index']
  #allocation1 [shape = 'u32[144,128]{1,0:T(1,128)}', space=vmem, size = 0x12000, scoped, tag = 'internal scratch']
  %s0 = inlined_call_operand.vmem [shape: f32[2,54,128], index: 0, kind: input, shape index: {}]
  %s1 = inlined_call_operand.vmem [shape: f32[8,54], index: 1, kind: input, shape index: {}]
  %s2 = inlined_call_operand.vmem [shape: f32[8,1], index: 2, kind: input, shape index: {}]
  %s3 = inlined_call_operand.hbm [shape: f32[2,8,128], index: 3, kind: output, shape index: {}]
  %s4 = sld [smem:[#allocation0]]
  $region45: #{tpu_custom_call.1} parent=0
    _
  %s6 = ssub.s32 1, %s4
  %s7 = scalar_select 0, %s6, %s4
  $region1: #{tpu_custom_call.1} parent=0
    #allocation2 [shape = 'u8[8192]{0}', space=vmem, size = 0x2000, scoped, tag = 'output window, operand 0']
    #allocation3 [shape = 's32[2]{0}', space=sflag, size = 0x8, scoped, tag = 'scoped memory for tpu_custom_call.1']
    %8 = vsyncpa [#allocation3], 0
    %s9 = scalar_lea.sflag [#allocation3], 1
    %10 = vsyncpa %s9, 0
    loop: start=0, step=1, limit=4
    $region2: #{tpu_custom_call.1} parent=1 // loop_pre_header
      _
    $region3: #{tpu_custom_call.1} parent=1 // loop_header
      %s12 = sphi 0, %s16
      %p13 = scmp.ge.s32.totalorder %s12, 4
      %s19 = sphi 0, %s31
      %s20 = sphi 0, %s27
      %s21 = sphi 0, %s19
      %s22 = sphi 0, %s20
      %s23 = sphi 0, %s21
      %s24 = sphi 0, %s22
      %s36 = sphi 0, %s38
      %s39 = sphi 0, %s36
      %s40 = sphi 0, %s39
      %s56 = sphi 0, %s40
      %s60 = sphi 0, %s60
      %s62 = sphi 0, %s60
      %s63 = sphi 0, %s62
      %s77 = sphi 0, %s63
      %s81 = sphi 0, %s81
      %s83 = sphi 0, %s81
      %s84 = sphi 0, %s83
      %s98 = sphi 0, %s84
      %s106 = sphi 0, %s108
      %s109 = sphi 0, %s106
      %s110 = sphi 0, %s109
      %s126 = sphi 0, %s110
    $region4: #{tpu_custom_call.1} parent=1 // loop_header_branch
      %15 = sbr.rel (%p13) target = $region8
    $region5: #{tpu_custom_call.1} parent=1 // loop_body
      %s17 = ssub.s32 %s12, 1
      %s18 = ssub.s32 %s12, 2
      %s25 = sadd.s32 1, %s20
      %p26 = scmp.ge.s32.totalorder %s25, 1
      %s27 = scalar_select %p26, 0, %s25
      %s28 = sadd.s32 1, %s19
      %s29 = scalar_select %p26, %s28, %s19
      %p30 = scmp.ge.s32.totalorder %s29, 2
      %s31 = scalar_select %p30, 0, %s29
      %s32 = ssub.s32 %s19, %s31
      %s33 = ssub.s32 %s20, %s27
      %s34 = sor.u32 %s32, %s33
      %p35 = scmp.eq.s32.totalorder %s34, 0
      %s37 = sadd.s32 %s36, 1
      %s38 = scalar_select %p35, %s36, %s37
      %p41 = pneg %p35
      %p42 = scmp.eq.s32.totalorder %s12, 1
      %p43 = por %p41, %p42
      %p44 = scmp.ne.s32.totalorder %s36, %s39
      %p45 = scmp.eq.s32.totalorder %s12, 0
      %p46 = por %p44, %p45
      %p47 = scmp.ne.s32.totalorder %s36, %s39
      %p48 = scmp.eq.s32.totalorder %s17, 1
      %p49 = por %p47, %p48
      %p50 = scmp.ne.s32.totalorder %s39, %s40
      %p51 = scmp.eq.s32.totalorder %s17, 0
      %p52 = por %p50, %p51
      %p53 = scmp.ne.s32.totalorder %s39, %s40
      %p54 = scmp.eq.s32.totalorder %s18, 1
      %p55 = por %p53, %p54
      %p57 = scmp.ne.s32.totalorder %s40, %s56
      %p58 = scmp.eq.s32.totalorder %s18, 0
      %p59 = por %p57, %p58
      %s61 = sadd.s32 %s60, 1
      %p64 = scmp.eq.s32.totalorder %s12, 1
      %p65 = scmp.ne.s32.totalorder %s60, %s62
      %p66 = scmp.eq.s32.totalorder %s12, 0
      %p67 = por %p65, %p66
      %p68 = scmp.ne.s32.totalorder %s60, %s62
      %p69 = scmp.eq.s32.totalorder %s17, 1
      %p70 = por %p68, %p69
      %p71 = scmp.ne.s32.totalorder %s62, %s63
      %p72 = scmp.eq.s32.totalorder %s17, 0
      %p73 = por %p71, %p72
      %p74 = scmp.ne.s32.totalorder %s62, %s63
      %p75 = scmp.eq.s32.totalorder %s18, 1
      %p76 = por %p74, %p75
      %p78 = scmp.ne.s32.totalorder %s63, %s77
      %p79 = scmp.eq.s32.totalorder %s18, 0
      %p80 = por %p78, %p79
      %s82 = sadd.s32 %s81, 1
      %p85 = scmp.eq.s32.totalorder %s12, 1
      %p86 = scmp.ne.s32.totalorder %s81, %s83
      %p87 = scmp.eq.s32.totalorder %s12, 0
      %p88 = por %p86, %p87
      %p89 = scmp.ne.s32.totalorder %s81, %s83
      %p90 = scmp.eq.s32.totalorder %s17, 1
      %p91 = por %p89, %p90
      %p92 = scmp.ne.s32.totalorder %s83, %s84
      %p93 = scmp.eq.s32.totalorder %s17, 0
      %p94 = por %p92, %p93
      %p95 = scmp.ne.s32.totalorder %s83, %s84
      %p96 = scmp.eq.s32.totalorder %s18, 1
      %p97 = por %p95, %p96
      %p99 = scmp.ne.s32.totalorder %s84, %s98
      %p100 = scmp.eq.s32.totalorder %s18, 0
      %p101 = por %p99, %p100
      %s102 = ssub.s32 %s19, %s31
      %s103 = ssub.s32 %s20, %s27
      %s104 = sor.u32 %s102, %s103
      %p105 = scmp.eq.s32.totalorder %s104, 0
      %s107 = sadd.s32 %s106, 1
      %s108 = scalar_select %p105, %s106, %s107
      %p111 = pneg %p105
      %p112 = scmp.eq.s32.totalorder %s12, 1
      %p113 = por %p111, %p112
      %p114 = scmp.ne.s32.totalorder %s106, %s109
      %p115 = scmp.eq.s32.totalorder %s12, 0
      %p116 = por %p114, %p115
      %p117 = scmp.ne.s32.totalorder %s106, %s109
      %p118 = scmp.eq.s32.totalorder %s17, 1
      %p119 = por %p117, %p118
      %p120 = scmp.ne.s32.totalorder %s109, %s110
      %p121 = scmp.eq.s32.totalorder %s17, 0
      %p122 = por %p120, %p121
      %p123 = scmp.ne.s32.totalorder %s109, %s110
      %p124 = scmp.eq.s32.totalorder %s18, 1
      %p125 = por %p123, %p124
      %p127 = scmp.ne.s32.totalorder %s110, %s126
      %p128 = scmp.eq.s32.totalorder %s18, 0
      %p129 = por %p127, %p128
      %p130 = scmp.le.s32.totalorder 1, %s12
      %p131 = scmp.lt.s32.totalorder %s12, 3
      %p132 = pnand %p130, %p131
      %p133 = pneg %p132
      // Predicated region
      $region9: #{tpu_custom_call.1} parent=5 // pred_check
        _
      $region10: #{tpu_custom_call.1} parent=5 // pred_check_branch
        %135 = sbr.rel (%p132) target = $region12
      $region11: #{tpu_custom_call.1} parent=5 // pred_region
        %s136 = ssub.s32 %s12, 1
        // Predicated region
        $region13: #{tpu_custom_call.1} parent=11 // pred_check
          %p137 = pneg %p73
        $region14: #{tpu_custom_call.1} parent=11 // pred_check_branch
          %139 = sbr.rel (%p137) target = $region16
        $region15: #{tpu_custom_call.1} parent=11 // pred_region
          _
        $region16: #{tpu_custom_call.1} parent=11 // pred_fallthru
          _
        // Predicated region
        $region17: #{tpu_custom_call.1} parent=11 // pred_check
          %p140 = pneg %p94
        $region18: #{tpu_custom_call.1} parent=11 // pred_check_branch
          %142 = sbr.rel (%p140) target = $region20
        $region19: #{tpu_custom_call.1} parent=11 // pred_region
          _
        $region20: #{tpu_custom_call.1} parent=11 // pred_fallthru
          _
      $region12: #{tpu_custom_call.1} parent=5 // pred_fallthru
        _
      %p143 = scmp.lt.s32.totalorder %s12, 2
      // Predicated region
      $region21: #{tpu_custom_call.1} parent=5 // pred_check
        %p144 = pneg %p143
      $region22: #{tpu_custom_call.1} parent=5 // pred_check_branch
        %146 = sbr.rel (%p144) target = $region24
      $region23: #{tpu_custom_call.1} parent=5 // pred_region
        // Predicated region
        $region25: #{tpu_custom_call.1} parent=23 // pred_check
          %p147 = pneg %p46
        $region26: #{tpu_custom_call.1} parent=23 // pred_check_branch
          %149 = sbr.rel (%p147) target = $region28
        $region27: #{tpu_custom_call.1} parent=23 // pred_region
          %p150 = scmp.lt.s32.totalorder %s19, 1
          %s151 = scalar_select %p150, %s19, 1
          %p152 = scmp.lt.s32.totalorder %s20, 0
          %s153 = scalar_select %p152, %s20, 0
          %s154 = smul.addr %s151, 7
          %s155 = sadd.s32 %s153, %s154
          %s156 = smul.addr %s155, 8
          %s157 = scalar_lea.vmem %s0, %s156
        $region28: #{tpu_custom_call.1} parent=23 // pred_fallthru
          _
      $region24: #{tpu_custom_call.1} parent=5 // pred_fallthru
        _
      %p158 = scmp.le.s32.totalorder 1, %s12
      %p159 = scmp.lt.s32.totalorder %s12, 3
      %p160 = pnand %p158, %p159
      %p161 = pneg %p160
      // Predicated region
      $region29: #{tpu_custom_call.1} parent=5 // pred_check
        _
      $region30: #{tpu_custom_call.1} parent=5 // pred_check_branch
        %163 = sbr.rel (%p160) target = $region32
      $region31: #{tpu_custom_call.1} parent=5 // pred_region
        %s164 = ssub.s32 %s12, 1
        %p165 = scmp.lt.s32.totalorder %s21, 1
        %s166 = scalar_select %p165, %s21, 1
        %p167 = scmp.lt.s32.totalorder %s22, 0
        %s168 = scalar_select %p167, %s22, 0
        %s169 = smul.addr %s166, 7
        %s170 = sadd.s32 %s168, %s169
        %s171 = smul.addr %s170, 8
        %s172 = scalar_lea.vmem %s0, %s171
        %p173 = pneg %p52
        %p174 = pneg %p49
        %p175 = pneg %p73
        %p176 = pneg %p70
        %p177 = pneg %p94
        %p178 = pneg %p91
        %p179 = pneg %p122
        %p180 = pneg %p119
        %s181 = sand.u32 %s109, 1
        %s182 = scalar_lea.sflag [#allocation3], %s181
        %s183 = sand.u32 %s109, 1
        %s184 = smul.addr %s183, 8
        %s185 = scalar_lea.vmem [#allocation2], %s184
        %p186 = scmp.lt.s32.totalorder %s21, 1
        %s187 = scalar_select %p186, %s21, 1
        %p188 = scmp.lt.s32.totalorder %s22, 0
        %s189 = scalar_select %p188, %s22, 0
        %s190 = smul.addr %s187, 7
        %s191 = sadd.s32 %s189, %s190
        %s192 = smul.addr %s191, 8
        %s193 = scalar_lea.vmem %s0, %s192
        %v194 = vld [vmem:[%s1] sm:$0xff]
        %v195 = vld [vmem:[%s193] sm:$0xff]
        %v196 = vld [vmem:[%s193 + $0x8] sm:$0xff]
        %v197 = vld [vmem:[%s193 + $0x10] sm:$0xff]
        %v198 = vld [vmem:[%s193 + $0x18] sm:$0xff]
        %v199 = vld [vmem:[%s193 + $0x20] sm:$0xff]
        %v200 = vld [vmem:[%s193 + $0x28] sm:$0xff]
        %v201 = vld [vmem:[%s193 + $0x30] sm:$0x3f]
        %v202 = vld [vmem:[%s2] sm:$0xff]
        %204 = vset.pattern.permute.xlu0 0
        %205 = vperm.xlu0 %204, %v202
        %v206 = vpop.permute.xlu0 %205
        %vm208 = vcmask 441344
        %v210 = vsel %vm208, %v194, 0
        %vm212 = vcmask 1045504
        %v214 = vsel %vm212, %v201, 0
        %216 = vmatprep.subr.mxu0 0.0
        %217 = vmatpush1.msra.mxu0 0.0
        %218 = vmatprep.subr.mxu0 0.0
        %219 = vmatpush1.msra.mxu0 0.0
        %220 = vmatprep.subr.mxu0 0.0
        %221 = vmatpush1.msra.mxu0 0.0
        %222 = vmatprep.subr.mxu0 0.0
        %223 = vmatpush1.msra.mxu0 0.0
        %224 = vmatprep.subr.mxu0 0.0
        %225 = vmatpush1.msra.mxu0 0.0
        %226 = vmatprep.subr.mxu0 0.0
        %227 = vmatpush1.msra.mxu0 0.0
        %228 = vmatprep.subr.mxu0 0.0
        %229 = vmatpush1.msra.mxu0 0.0
        %230 = vmatprep.subr.mxu0 0.0
        %231 = vmatpush1.msra.mxu0 0.0
        %232 = vmatprep.subr.mxu0 0.0
        %233 = vmatpush1.msra.mxu0 0.0
        %234 = vmatprep.subr.mxu0 0.0
        %235 = vmatpush1.msra.mxu0 %v214
        %236 = vmatprep.subr.mxu0 0.0
        %237 = vmatpush1.msra.mxu0 %v200
        %238 = vmatprep.subr.mxu0 0.0
        %239 = vmatpush1.msra.mxu0 %v199
        %240 = vmatprep.subr.mxu0 0.0
        %241 = vmatpush1.msra.mxu0 %v198
        %242 = vmatprep.subr.mxu0 0.0
        %243 = vmatpush1.msra.mxu0 %v197
        %244 = vmatprep.subr.mxu0 0.0
        %245 = vmatpush1.msra.mxu0 %v196
        %246 = vmatprep.subr.mxu0 0.0
        %247 = vmatpush1.msra.mxu0 %v195
        %248 = vmatprep.subr.mxu0 0.0
        %249 = vmatpush2.msra.mxu0 0.0
        %250 = vmatprep.subr.mxu0 0.0
        %251 = vmatpush2.msra.mxu0 0.0
        %252 = vmatprep.subr.mxu0 0.0
        %253 = vmatpush2.msra.mxu0 0.0
        %254 = vmatprep.subr.mxu0 0.0
        %255 = vmatpush2.msra.mxu0 0.0
        %256 = vmatprep.subr.mxu0 0.0
        %257 = vmatpush2.msra.mxu0 0.0
        %258 = vmatprep.subr.mxu0 0.0
        %259 = vmatpush2.msra.mxu0 0.0
        %260 = vmatprep.subr.mxu0 0.0
        %261 = vmatpush2.msra.mxu0 0.0
        %262 = vmatprep.subr.mxu0 0.0
        %263 = vmatpush2.msra.mxu0 0.0
        %264 = vmatprep.subr.mxu0 0.0
        %265 = vmatpush2.msra.mxu0 0.0
        %266 = vmatprep.subr.mxu0 0.0
        %267 = vmatpush2.msra.mxu0 0.0
        %268 = vmatprep.subr.mxu0 0.0
        %269 = vmatpush2.msra.mxu0 0.0
        %270 = vmatprep.subr.mxu0 0.0
        %271 = vmatpush2.msra.mxu0 0.0
        %272 = vmatprep.subr.mxu0 0.0
        %273 = vmatpush2.msra.mxu0 0.0
        %274 = vmatprep.subr.mxu0 0.0
        %275 = vmatpush2.msra.mxu0 0.0
        %276 = vmatprep.subr.mxu0 0.0
        %277 = vmatpush2.msra.mxu0 0.0
        %278 = vmatprep.subr.mxu0 0.0
        %279 = vmatpush2.msra.mxu0 0.0
        %280 = vmatprep.mubr.f32.mxu0 0.0
        %281 = vmatmul.mubr.f32.gmra.mxu0 %v210
        %v282 = vpop.f32.mrf.mxu0
        %v283 = vadd.f32 %v206, %v282
        %v284 = vpop.f32.mrf.mxu0
        %285 = vdwg.mxu0
        %v286 = vmax.f32 %v283, 0.0
        %287 = vst [vmem:[%s185] sm:$0xff] %v286
        %s288 = sand.u32 %s109, 1
        %s289 = scalar_lea.sflag [#allocation3], %s288
        %s290 = sand.u32 %s109, 1
        %s291 = smul.addr %s290, 8
        %s292 = scalar_lea.vmem [#allocation2], %s291
        // Predicated region
        $region33: #{tpu_custom_call.1} parent=31 // pred_check
          %p293 = pneg %p119
        $region34: #{tpu_custom_call.1} parent=31 // pred_check_branch
          %295 = sbr.rel (%p293) target = $region36
        $region35: #{tpu_custom_call.1} parent=31 // pred_region
          %s297 = ssub.s32 128, 128
          %298 = vsyncadd %s289, %s297
          %s299 = sadd.s32 %s22, %s21
          %s300 = smul.addr %s299, 128
          %s301 = scalar_lea.hbm %s3, %s300
          %s303 = sshll.u32 %s292, 4
          %s304 = int_to_ptr.vmem [resolvable:$true] %s303
          %306 = dma.vmem_to_hbm [thread:$0]  %s304, 128, %s301, %s289
        $region36: #{tpu_custom_call.1} parent=31 // pred_fallthru
          _
      $region32: #{tpu_custom_call.1} parent=5 // pred_fallthru
        _
      %p307 = scmp.le.s32.totalorder 2, %s12
      // Predicated region
      $region37: #{tpu_custom_call.1} parent=5 // pred_check
        %p308 = pneg %p307
      $region38: #{tpu_custom_call.1} parent=5 // pred_check_branch
        %310 = sbr.rel (%p308) target = $region40
      $region39: #{tpu_custom_call.1} parent=5 // pred_region
        %s311 = ssub.s32 %s12, 2
        // Predicated region
        $region41: #{tpu_custom_call.1} parent=39 // pred_check
          %p312 = pneg %p125
        $region42: #{tpu_custom_call.1} parent=39 // pred_check_branch
          %314 = sbr.rel (%p312) target = $region44
        $region43: #{tpu_custom_call.1} parent=39 // pred_region
          %s315 = sand.u32 %s110, 1
          %s316 = scalar_lea.sflag [#allocation3], %s315
          %s317 = sand.u32 %s110, 1
          %s318 = smul.addr %s317, 8
          %s319 = scalar_lea.vmem [#allocation2], %s318
          %320 = dma.done %s316, 128
        $region44: #{tpu_custom_call.1} parent=39 // pred_fallthru
          _
      $region40: #{tpu_custom_call.1} parent=5 // pred_fallthru
        _
    $region6: #{tpu_custom_call.1} parent=1 // loop_footer
      %s16 = sadd.s32 1, %s12
    $region7: #{tpu_custom_call.1} parent=1 // loop_footer_branch
      %11 = sbr.rel target = $region3
    $region8: #{tpu_custom_call.1} parent=1 // loop_exit
      _
    %321 = vsyncpa [#allocation3], 1
    %s322 = scalar_lea.sflag [#allocation3], 1
    %323 = vsyncpa %s322, 1

</llo_original>
